<compile_context>
chip_gen: v6e
topology: v6e:2x2x1
jax: 0.10.0
libtpu: 0.0.40
codegen_flags: <defaults>
</compile_context>

<pallas_src>
import functools

import jax
import jax.numpy as jnp
from jax.experimental import pallas as pl
from jax.experimental.pallas import tpu as pltpu

LANES = 128
SUBLANES = 8
MAX_BLOCK_ROWS = 2048  # 2048 x 128 x 4B = 1 MiB per f32 input tile per step


def _ssi_block_kernel(x_ref, y_ref, out_ref, *, block_rows, total_rows, needs_mask):
    x = jnp.maximum(x_ref[...].astype(jnp.float32), 0.0)   # torch.maximum(0, input)
    y = y_ref[...].astype(jnp.float32)
    # 2 * min(x, y) / (x + y); the divide goes to the EUP slot via reciprocal.
    ratio = (2.0 * jnp.minimum(x, y)) * pl.reciprocal(x + y, approx=False)

    if needs_mask:
        # Ragged last block: mask rows beyond the real data.  Select (not
        # multiply) AFTER computing ratio so OOB garbage (NaN/Inf) never
        # reaches the partial sum.
        row0 = pl.program_id(0) * block_rows
        row = jax.lax.broadcasted_iota(jnp.int32, ratio.shape, 0) + row0
        ratio = jnp.where(row < total_rows, ratio, 0.0)

    # Fold the (block_rows, 128) tile down to one (1, 8, 128) partial-sum block.
    # The reshape is (8,128)-tile aligned -> pure VPU vreg adds (no XLU).
    out_ref[...] = jnp.sum(
        ratio.reshape(block_rows // SUBLANES, SUBLANES, LANES),
        axis=0, keepdims=True)


def _ssi_tail_sum(x_flat, y_flat):
    # Tiny (< 8*128 elements) remainder handled in plain JAX.
    x = jnp.maximum(x_flat.astype(jnp.float32), 0.0)
    y = y_flat.astype(jnp.float32)
    return jnp.sum(2.0 * jnp.minimum(x, y) / (x + y))


@jax.jit
def ssi(inp: jax.Array, tgt: jax.Array) -> jax.Array:
    assert inp.shape == tgt.shape, "input and target must share a shape"
    n = 1
    for d in inp.shape:
        n *= d

    x_flat = inp.reshape(-1)
    y_flat = tgt.reshape(-1)

    rows = n // LANES                      # full lane-dense rows
    total = jnp.float32(0.0)
    tail_start = 0

    if rows >= SUBLANES:
        main_n = rows * LANES
        # block_rows <= rows, multiple of 8; last block may be partial+masked.
        block_rows = min(MAX_BLOCK_ROWS, (rows // SUBLANES) * SUBLANES)
        num_blocks = pl.cdiv(rows, block_rows)
        needs_mask = (rows % block_rows) != 0

        if main_n == n:
            x2d = x_flat.reshape(rows, LANES)          # pure reshape, no copy
            y2d = y_flat.reshape(rows, LANES)
        else:
            x2d = x_flat[:main_n].reshape(rows, LANES)
            y2d = y_flat[:main_n].reshape(rows, LANES)

        kernel = functools.partial(
            _ssi_block_kernel,
            block_rows=block_rows, total_rows=rows, needs_mask=needs_mask)

        partials = pl.pallas_call(
            kernel,
            out_shape=jax.ShapeDtypeStruct((num_blocks, SUBLANES, LANES), jnp.float32),
            grid=(num_blocks,),
            in_specs=[
                pl.BlockSpec((block_rows, LANES), lambda i: (i, 0)),
                pl.BlockSpec((block_rows, LANES), lambda i: (i, 0)),
            ],
            out_specs=pl.BlockSpec((1, SUBLANES, LANES), lambda i: (i, 0, 0)),
            compiler_params=pltpu.CompilerParams(
                dimension_semantics=("parallel",),   # lets v7x shard across both TCs
            ),
        )(x2d, y2d)

        total = total + jnp.sum(partials)
        tail_start = main_n

    if tail_start < n:
        total = total + _ssi_tail_sum(x_flat[tail_start:], y_flat[tail_start:])

    # sum(...) / len(target); PyTorch len() is the leading-dim size.
    return total / jnp.float32(tgt.shape[0])


if __name__ == "__main__":
    key = jax.random.PRNGKey(0)
    k1, k2 = jax.random.split(key)
    # NCHW-style prediction/target pair.  Normal input exercises the ReLU;
    # strictly-positive target keeps the denominator away from zero.
    x = jax.random.normal(k1, (2, 4, 16, 16), dtype=jnp.float32)
    y = jax.random.uniform(k2, (2, 4, 16, 16), dtype=jnp.float32) + 0.5

    result = ssi(x, y)
    jax.block_until_ready(result)

    # Pure-JAX reference of the PyTorch formula.
    xr = jnp.maximum(x, 0.0)
    ref = jnp.sum(2.0 * jnp.minimum(xr, y) / (xr + y)) / y.shape[0]
    assert jnp.allclose(result, ref, rtol=1e-5, atol=1e-5), (result, ref)

    print("KERNEL_OK")
</pallas_src>

<mosaic_0001>
module attributes {stable_mosaic.version = 11 : i64} {
  func.func @_ssi_block_kernel(%arg0: i32, %arg1: memref<16x128xf32, #tpu.memory_space<vmem>>, %arg2: memref<16x128xf32, #tpu.memory_space<vmem>>, %arg3: memref<1x8x128xf32, #tpu.memory_space<vmem>>) attributes {dimension_semantics = [#tpu.dimension_semantics<parallel>], iteration_bounds = array<i64: 1>, scalar_prefetch = 0 : i64, scratch_operands = 0 : i64, tpu.core_type = #tpu.core_type<tc>, window_params = [{transform_indices = @transform_0, window_bounds = array<i64: 16, 128>}, {transform_indices = @transform_1, window_bounds = array<i64: 16, 128>}, {transform_indices = @transform_2, window_bounds = array<i64: 1, 8, 128>}]} {
    %c0 = arith.constant 0 : index
    %c0_0 = arith.constant 0 : index
    %0 = vector.load %arg1[%c0, %c0_0] : memref<16x128xf32, #tpu.memory_space<vmem>>, vector<16x128xf32>
    %cst = arith.constant 0.000000e+00 : f32
    %1 = vector.broadcast %cst : f32 to vector<16x128xf32>
    %2 = arith.maximumf %0, %1 : vector<16x128xf32>
    %c0_1 = arith.constant 0 : index
    %c0_2 = arith.constant 0 : index
    %3 = vector.load %arg2[%c0_1, %c0_2] : memref<16x128xf32, #tpu.memory_space<vmem>>, vector<16x128xf32>
    %4 = arith.minimumf %2, %3 : vector<16x128xf32>
    %cst_3 = arith.constant 2.000000e+00 : f32
    %5 = vector.broadcast %cst_3 : f32 to vector<16x128xf32>
    %6 = arith.mulf %5, %4 : vector<16x128xf32>
    %7 = arith.addf %2, %3 : vector<16x128xf32>
    %8 = tpu.reciprocal %7 : vector<16x128xf32> -> vector<16x128xf32>
    %9 = arith.mulf %6, %8 : vector<16x128xf32>
    %10 = vector.shape_cast %9 : vector<16x128xf32> to vector<2x8x128xf32>
    %cst_4 = arith.constant dense<0.000000e+00> : vector<8x128xf32>
    %11 = vector.multi_reduction <add>, %10, %cst_4 [0] : vector<2x8x128xf32> to vector<8x128xf32>
    %12 = vector.shape_cast %11 : vector<8x128xf32> to vector<1x8x128xf32>
    %c0_5 = arith.constant 0 : index
    %c0_6 = arith.constant 0 : index
    %c0_7 = arith.constant 0 : index
    %13 = vector.load %arg3[%c0_5, %c0_6, %c0_7] : memref<1x8x128xf32, #tpu.memory_space<vmem>>, vector<1x8x128xf32>
    tpu.vector_store %arg3[%c0_5, %c0_6, %c0_7], %12 {strides = array<i32>} : memref<1x8x128xf32, #tpu.memory_space<vmem>>, vector<1x8x128xf32>,
    return
  }
  func.func @transform_0(%arg0: i32) -> (i32, i32) {
    %c0_i32 = arith.constant 0 : i32
    %c0_i32_0 = arith.constant 0 : i32
    return %arg0, %c0_i32 : i32, i32
  }
  func.func @transform_1(%arg0: i32) -> (i32, i32) {
    %c0_i32 = arith.constant 0 : i32
    %c0_i32_0 = arith.constant 0 : i32
    return %arg0, %c0_i32 : i32, i32
  }
  func.func @transform_2(%arg0: i32) -> (i32, i32, i32) {
    %c0_i32 = arith.constant 0 : i32
    %c0_i32_0 = arith.constant 0 : i32
    %c0_i32_1 = arith.constant 0 : i32
    return %arg0, %c0_i32, %c0_i32_0 : i32, i32, i32
  }
}

</mosaic_0001>

<llo_original>
// kernel: ssi.1
$region0: #{ssi.1}
  #allocation0 [shape = 'u32[]', space=smem, size = 0x4, offset = 0x4, fixed_abs, tag = 'smem constant byte address 0x4 - core index']
  #allocation1 [shape = 'u32[144,128]{1,0:T(1,128)}', space=vmem, size = 0x12000, scoped, tag = 'internal scratch']
  %s0 = inlined_call_operand.vmem [shape: f32[16,128], index: 0, kind: input, shape index: {}]
  %s1 = inlined_call_operand.vmem [shape: f32[16,128], index: 1, kind: input, shape index: {}]
  %s2 = inlined_call_operand.vmem [shape: f32[1,8,128], index: 2, kind: output, shape index: {}]
  %s3 = sld [smem:[#allocation0]]
  $region18: #{ssi.1} parent=0
    _
  %s5 = ssub.s32 1, %s3
  %s6 = scalar_select 0, %s5, %s3
  // Predicated region
  $region2: #{ssi.1} parent=0 // pred_check
    _
  $region3: #{ssi.1} parent=0 // pred_check_branch
    %8 = sbr.rel (0) target = $region5
  $region4: #{ssi.1} parent=0 // pred_region
    _
  $region5: #{ssi.1} parent=0 // pred_fallthru
    _
  // Predicated region
  $region6: #{ssi.1} parent=0 // pred_check
    _
  $region7: #{ssi.1} parent=0 // pred_check_branch
    %10 = sbr.rel (0) target = $region9
  $region8: #{ssi.1} parent=0 // pred_region
    _
  $region9: #{ssi.1} parent=0 // pred_fallthru
    _
  %v11 = vld [vmem:[%s0] sm:$0xff]
  %v12 = vld [vmem:[%s0 + $0x8] sm:$0xff]
  %v13 = vmax.f32 %v11, 0.0
  %v14 = vmax.f32 %v12, 0.0
  %v15 = vld [vmem:[%s1] sm:$0xff]
  %v16 = vld [vmem:[%s1 + $0x8] sm:$0xff]
  %v17 = vmin.f32 %v13, %v15
  %v18 = vmin.f32 %v14, %v16
  %v19 = vmul.f32 %v17, 2.0
  %v20 = vmul.f32 %v18, 2.0
  %v21 = vadd.f32 %v13, %v15
  %v22 = vadd.f32 %v14, %v16
  %v23 = vrcp.pop %v21
  %v24 = vrcp.pop %v22
  %v25 = vmul.f32 %v19, %v23
  %v26 = vmul.f32 %v20, %v24
  %v27 = vadd.f32 %v25, %v26
  %28 = vst [vmem:[%s2] sm:$0xff] %v27
  // Predicated region
  $region10: #{ssi.1} parent=0 // pred_check
    _
  $region11: #{ssi.1} parent=0 // pred_check_branch
    %30 = sbr.rel (0) target = $region13
  $region12: #{ssi.1} parent=0 // pred_region
    _
  $region13: #{ssi.1} parent=0 // pred_fallthru
    _
  // Predicated region
  $region14: #{ssi.1} parent=0 // pred_check
    _
  $region15: #{ssi.1} parent=0 // pred_check_branch
    %32 = sbr.rel (0) target = $region17
  $region16: #{ssi.1} parent=0 // pred_region
    _
  $region17: #{ssi.1} parent=0 // pred_fallthru
    _

</llo_original>
